<compile_context>
chip_gen: v5e
topology: v5e:2x2
jax: 0.10.0
libtpu: 0.0.40
codegen_flags: <defaults>
</compile_context>

<pallas_src>
import jax
import jax.numpy as jnp
from jax.experimental import pallas as pl
from jax.experimental.pallas import tpu as pltpu

_LANES = 128

# Minimum sublane multiple for the second-to-last block dim, per dtype.
_SUBLANE_MULT = {
    jnp.dtype(jnp.float32): 8,
    jnp.dtype(jnp.bfloat16): 16,
    jnp.dtype(jnp.float16): 16,
    jnp.dtype(jnp.int8): 32,
    jnp.dtype(jnp.uint8): 32,
}


def _pgclip_kernel(minmax_ref, x_ref, o_ref):
    # minmax_ref: SMEM (2,) float32 -> [clip_min, clip_max]
    lo = minmax_ref[0].astype(x_ref.dtype)
    hi = minmax_ref[1].astype(x_ref.dtype)
    o_ref[...] = jnp.minimum(jnp.maximum(x_ref[...], lo), hi)


def pgclip(x, clip_min, clip_max, *, target_block_bytes=2 * 1024 * 1024):
    """Elementwise clip via Pallas. x: any shape (e.g. NCHW)."""
    orig_shape = x.shape
    dtype = x.dtype
    n = x.size
    itemsize = jnp.dtype(dtype).itemsize
    sub_mult = _SUBLANE_MULT.get(jnp.dtype(dtype), 8)

    # Flatten to a lane-dense (rows, 128) slab.
    x_flat = jnp.ravel(x)
    lanes_pad = (-n) % _LANES
    if lanes_pad:
        # TODO(synk): rare unaligned-numel case still pays one pad copy + a
        # slice-back; the common (numel % 128 == 0) path is zero-copy.
        chunk = sub_mult * _LANES
        x_flat = jnp.pad(x_flat, (0, (-n) % chunk))
    rows = x_flat.size // _LANES
    x2d = x_flat.reshape(rows, _LANES)

    # Dtype-aware block sizing: ~target_block_bytes per block, sublane-aligned,
    # never (much) larger than the array itself. Ragged last block is masked.
    target_rows = max(sub_mult, target_block_bytes // (_LANES * itemsize))
    target_rows = (target_rows // sub_mult) * sub_mult
    rows_ceil = pl.cdiv(rows, sub_mult) * sub_mult
    block_rows = int(min(target_rows, rows_ceil))

    grid = (pl.cdiv(rows, block_rows),)
    minmax = jnp.asarray([clip_min, clip_max], dtype=jnp.float32)

    out2d = pl.pallas_call(
        _pgclip_kernel,
        out_shape=jax.ShapeDtypeStruct((rows, _LANES), dtype),
        grid_spec=pltpu.PrefetchScalarGridSpec(
            num_scalar_prefetch=0,
            grid=grid,
            in_specs=[
                pl.BlockSpec(memory_space=pltpu.MemorySpace.SMEM),
                pl.BlockSpec((block_rows, _LANES), lambda i: (i, 0)),
            ],
            out_specs=pl.BlockSpec((block_rows, _LANES), lambda i: (i, 0)),
        ),
        compiler_params=pltpu.CompilerParams(
            dimension_semantics=("parallel",),
        ),
        cost_estimate=pl.CostEstimate(
            flops=2 * n,
            transcendentals=0,
            bytes_accessed=2 * n * itemsize,
        ),
    )(minmax, x2d)

    if lanes_pad:
        return out2d.reshape(-1)[:n].reshape(orig_shape)
    return out2d.reshape(orig_shape)


class PGClip:
    """JAX/Pallas equivalent of the PyTorch PGClip module (forward only)."""

    def __init__(self, clip_min, clip_max):
        self.min = clip_min
        self.max = clip_max

    def __call__(self, x):
        return pgclip(x, self.min, self.max)


if __name__ == "__main__":
    key = jax.random.PRNGKey(0)
    mod = PGClip(clip_min=-0.5, clip_max=0.5)

    # Primary test: NCHW f32, numel % 128 == 0 (zero-copy path).
    x = jax.random.normal(key, (2, 4, 16, 16), dtype=jnp.float32) * 2.0
    y = jax.block_until_ready(mod(x))
    ref = jnp.clip(x, -0.5, 0.5)
    assert y.shape == x.shape and y.dtype == x.dtype
    assert jnp.allclose(y, ref), "f32 mismatch vs reference clip"

    # bf16 path (dtype-aware sublane multiple = 16).
    xb = x.astype(jnp.bfloat16)
    yb = jax.block_until_ready(mod(xb))
    assert yb.dtype == jnp.bfloat16 and jnp.allclose(yb, jnp.clip(xb, -0.5, 0.5))

    # Unaligned-numel fallback path (pad + slice-back).
    x3 = jax.random.normal(jax.random.PRNGKey(1), (3, 5, 7), dtype=jnp.float32) * 2.0
    y3 = jax.block_until_ready(mod(x3))
    assert y3.shape == x3.shape and jnp.allclose(y3, jnp.clip(x3, -0.5, 0.5))

    print("KERNEL_OK")
</pallas_src>

<mosaic_0001>
module attributes {stable_mosaic.version = 11 : i64} {
  func.func @_pgclip_kernel(%arg0: i32, %arg1: memref<2xf32, #tpu.memory_space<smem>>, %arg2: memref<16x128xf32, #tpu.memory_space<vmem>>, %arg3: memref<16x128xf32, #tpu.memory_space<vmem>>) attributes {dimension_semantics = [#tpu.dimension_semantics<parallel>], iteration_bounds = array<i64: 1>, scalar_prefetch = 0 : i64, scratch_operands = 0 : i64, tpu.core_type = #tpu.core_type<tc>, window_params = [{transform_indices = @transform_0, window_bounds = array<i64: 2>}, {transform_indices = @transform_1, window_bounds = array<i64: 16, 128>}, {transform_indices = @transform_2, window_bounds = array<i64: 16, 128>}]} {
    %c0 = arith.constant 0 : index
    %0 = memref.load %arg1[%c0] : memref<2xf32, #tpu.memory_space<smem>>
    %c1 = arith.constant 1 : index
    %1 = memref.load %arg1[%c1] : memref<2xf32, #tpu.memory_space<smem>>
    %c0_0 = arith.constant 0 : index
    %c0_1 = arith.constant 0 : index
    %2 = vector.load %arg2[%c0_0, %c0_1] : memref<16x128xf32, #tpu.memory_space<vmem>>, vector<16x128xf32>
    %3 = vector.broadcast %0 : f32 to vector<16x128xf32>
    %4 = arith.maximumf %2, %3 : vector<16x128xf32>
    %5 = vector.broadcast %1 : f32 to vector<16x128xf32>
    %6 = arith.minimumf %4, %5 : vector<16x128xf32>
    %c0_2 = arith.constant 0 : index
    %c0_3 = arith.constant 0 : index
    %7 = vector.load %arg3[%c0_2, %c0_3] : memref<16x128xf32, #tpu.memory_space<vmem>>, vector<16x128xf32>
    tpu.vector_store %arg3[%c0_2, %c0_3], %6 {strides = array<i32>} : memref<16x128xf32, #tpu.memory_space<vmem>>, vector<16x128xf32>,
    return
  }
  func.func @transform_0(%arg0: i32) -> i32 {
    %c0_i32 = arith.constant 0 : i32
    %c0_i32_0 = arith.constant 0 : i32
    return %c0_i32 : i32
  }
  func.func @transform_1(%arg0: i32) -> (i32, i32) {
    %c0_i32 = arith.constant 0 : i32
    %c0_i32_0 = arith.constant 0 : i32
    return %arg0, %c0_i32 : i32, i32
  }
  func.func @transform_2(%arg0: i32) -> (i32, i32) {
    %c0_i32 = arith.constant 0 : i32
    %c0_i32_0 = arith.constant 0 : i32
    return %arg0, %c0_i32 : i32, i32
  }
}

</mosaic_0001>

<llo_original>
// kernel: tpu_custom_call.1
$region0: #{tpu_custom_call.1}
  #allocation0 [shape = 'u32[]', space=smem, size = 0x4, offset = 0x4, fixed_abs, tag = 'smem constant byte address 0x4 - core index']
  #allocation1 [shape = 'u32[72,128]{1,0:T(1,128)}', space=vmem, size = 0x9000, scoped, tag = 'internal scratch']
  %s0 = inlined_call_operand.hbm [shape: f32[2], index: 0, kind: input, shape index: {}]
  %s1 = inlined_call_operand.hbm [shape: f32[16,128], index: 1, kind: input, shape index: {}]
  %s2 = inlined_call_operand.hbm [shape: f32[16,128], index: 2, kind: output, shape index: {}]
  %s3 = sld [smem:[#allocation0]]
  $region26: #{tpu_custom_call.1} parent=0
    _
  %s5 = ssub.s32 1, %s3
  %s6 = scalar_select 0, %s5, %s3
  $region1: #{tpu_custom_call.1} parent=0
    #allocation2 [shape = 'u8[512]{0}', space=smem, size = 0x200, scoped, tag = 'input window, operand 0, single buffered']
    #allocation3 [shape = 's32[1]{0}', space=sflag, size = 0x4, scoped, tag = 'scoped memory for tpu_custom_call.1']
    #allocation4 [shape = 's32[1]{0}', space=sflag, size = 0x4, scoped, tag = 'scoped memory for tpu_custom_call.1']
    #allocation5 [shape = 's32[1]{0}', space=sflag, size = 0x4, scoped, tag = 'scoped memory for tpu_custom_call.1']
    #allocation6 [shape = 'u8[8192]{0}', space=vmem, size = 0x2000, scoped, tag = 'input window, operand 1, single buffered']
    #allocation7 [shape = 'u8[8192]{0}', space=vmem, size = 0x2000, scoped, tag = 'output window, operand 0, single buffered']
    %7 = vsyncpa [#allocation5], 0
    %8 = vsyncpa [#allocation3], 0
    %9 = vsyncpa [#allocation4], 0
    // Predicated region
    $region2: #{tpu_custom_call.1} parent=1 // pred_check
      _
    $region3: #{tpu_custom_call.1} parent=1 // pred_check_branch
      %11 = sbr.rel (0) target = $region5
    $region4: #{tpu_custom_call.1} parent=1 // pred_region
      %13 = vsyncadd [#allocation5], 0
      %s15 = sshll.u32 %s0, 4
      %s16 = int_to_ptr.hbm [resolvable:$true] %s15
      %18 = dma.hbm_to_smem %s16, 16, [#allocation2], [#allocation5]
    $region5: #{tpu_custom_call.1} parent=1 // pred_fallthru
      _
    // Predicated region
    $region6: #{tpu_custom_call.1} parent=1 // pred_check
      _
    $region7: #{tpu_custom_call.1} parent=1 // pred_check_branch
      %20 = sbr.rel (0) target = $region9
    $region8: #{tpu_custom_call.1} parent=1 // pred_region
      %22 = vsyncadd [#allocation3], 0
      %s23 = sshll.u32 %s1, 4
      %s24 = int_to_ptr.hbm [resolvable:$true] %s23
      %s25 = sshll.u32 [#allocation6], 4
      %s26 = int_to_ptr.vmem [resolvable:$true] %s25
      %31 = dma.hbm_to_vmem [thread:$0]  %s24, 256, %s26, [#allocation3], 128, 128, 8
    $region9: #{tpu_custom_call.1} parent=1 // pred_fallthru
      _
    // Predicated region
    $region10: #{tpu_custom_call.1} parent=1 // pred_check
      _
    $region11: #{tpu_custom_call.1} parent=1 // pred_check_branch
      %33 = sbr.rel (0) target = $region13
    $region12: #{tpu_custom_call.1} parent=1 // pred_region
      %35 = dma.done [#allocation5], 16
    $region13: #{tpu_custom_call.1} parent=1 // pred_fallthru
      _
    // Predicated region
    $region14: #{tpu_custom_call.1} parent=1 // pred_check
      _
    $region15: #{tpu_custom_call.1} parent=1 // pred_check_branch
      %37 = sbr.rel (0) target = $region17
    $region16: #{tpu_custom_call.1} parent=1 // pred_region
      %39 = dma.done [#allocation3], 256
    $region17: #{tpu_custom_call.1} parent=1 // pred_fallthru
      _
    %40 = sfence
    %s41 = sld [smem:[#allocation2]]
    %s42 = sld [smem:[#allocation2 + $0x1]]
    %v43 = vld [vmem:[#allocation6] sm:$0xff]
    %v44 = vld [vmem:[#allocation6 + $0x8] sm:$0xff]
    %v45 = vstv %s41
    %v46 = vmax.f32 %v43, %v45
    %v47 = vmax.f32 %v44, %v45
    %v48 = vstv %s42
    %v49 = vmin.f32 %v46, %v48
    %v50 = vmin.f32 %v47, %v48
    %51 = vst [vmem:[#allocation7] sm:$0xff] %v49
    %52 = vst [vmem:[#allocation7 + $0x8] sm:$0xff] %v50
    // Predicated region
    $region18: #{tpu_custom_call.1} parent=1 // pred_check
      _
    $region19: #{tpu_custom_call.1} parent=1 // pred_check_branch
      %54 = sbr.rel (0) target = $region21
    $region20: #{tpu_custom_call.1} parent=1 // pred_region
      %56 = vsyncadd [#allocation4], 0
      %s57 = sshll.u32 [#allocation7], 4
      %s58 = int_to_ptr.vmem [resolvable:$true] %s57
      %s59 = sshll.u32 %s2, 4
      %s60 = int_to_ptr.hbm [resolvable:$true] %s59
      %65 = dma.vmem_to_hbm [thread:$0]  %s58, 256, %s60, [#allocation4], 128, 128, 8
    $region21: #{tpu_custom_call.1} parent=1 // pred_fallthru
      _
    // Predicated region
    $region22: #{tpu_custom_call.1} parent=1 // pred_check
      _
    $region23: #{tpu_custom_call.1} parent=1 // pred_check_branch
      %67 = sbr.rel (0) target = $region25
    $region24: #{tpu_custom_call.1} parent=1 // pred_region
      %69 = dma.done [#allocation4], 256
    $region25: #{tpu_custom_call.1} parent=1 // pred_fallthru
      _
    %70 = vsyncpa [#allocation3], 1
    %71 = vsyncpa [#allocation4], 1
    %72 = vsyncpa [#allocation5], 1

</llo_original>
